<compile_context>
chip_gen: v6e
topology: v6e:2x2x1
jax: 0.10.0
libtpu: 0.0.40
codegen_flags: <defaults>
</compile_context>

<pallas_src>
import functools

import jax
import jax.numpy as jnp
from jax.experimental import pallas as pl
from jax.experimental.pallas import tpu as pltpu


def _band_weights(w_hwio, W, Wo, stride, dtype):
    """Fold the dx taps + channel mixing of a 3x3 conv into banded matrices.

    Returns (3, W*C, Wo*C): for tap dy, B[dy][ix*C + ci, xo*C + co] equals
    w_hwio[dy, dx, ci, co] whenever ix == xo*stride + dx - 1 (zero otherwise,
    which also implements the zero padding and the stride along W).
    """
    C = w_hwio.shape[-1]
    rows = jnp.arange(W)
    cols = jnp.arange(Wo)
    bands = []
    for dy in range(3):
        B = jnp.zeros((W * C, Wo * C), jnp.float32)
        for dx in range(3):
            ix = cols * stride + (dx - 1)  # input column feeding each output column
            E = (rows[:, None] == ix[None, :]).astype(jnp.float32)  # (W, Wo)
            B = B + jnp.kron(E, w_hwio[dy, dx].astype(jnp.float32))
        bands.append(B)
    return jnp.stack(bands).astype(dtype)


def _pick_block_batch(N, H, m_target=256):
    """Largest divisor Nb of N with Nb*H <= m_target and >= 2 grid steps."""
    cap = max(1, m_target // max(H, 1))
    if N >= 2:
        cap = min(cap, max(1, N // 2))  # keep >= 2 grid steps for v7x dual TC
    best = 1
    for nb in range(1, min(cap, N) + 1):
        if N % nb == 0:
            best = nb
    return best


def dblock_kernel(*refs, H, W, Ho, Wo, C, stride, Nb):
    # refs (stride == 1): x_ref, b1_ref, b2_ref, o_ref, pad_ref
    # refs (stride >  1): x_ref, b1_ref, b2_ref, xs_ref, o_ref, pad_ref
    #   x_ref  : (Nb, H, W*C)    bf16  flattened NHWC rows (lane-dense)
    #   b1_ref : (3, W*C, W*C)   bf16  banded conv1 weights (one per dy tap)
    #   b2_ref : (3, W*C, Wo*C)  bf16  banded conv2 weights
    #   xs_ref : (Nb, Ho, Wo*C)  bf16  pre-subsampled residual (stride > 1 only)
    #   o_ref  : (Nb, Ho, Wo*C)  f32   output block (lane-dense store)
    #   pad_ref: (Nb, H+2, W*C)  bf16  scratch; rows 0 / H+1 are conv padding
    if stride == 1:
        x_ref, b1_ref, b2_ref, o_ref, pad_ref = refs
        xs_ref = x_ref
    else:
        x_ref, b1_ref, b2_ref, xs_ref, o_ref, pad_ref = refs

    Wf = W * C
    Wof = Wo * C
    M1 = Nb * H
    M2 = Nb * Ho

    # Re-zero only the 2*Nb padding rows each step (cheap, and correct no
    # matter how the batch axis is sharded across TensorCores).
    zrow = jnp.zeros((Nb, 1, Wf), pad_ref.dtype)
    pad_ref[:, pl.ds(0, 1), :] = zrow
    pad_ref[:, pl.ds(H + 1, 1), :] = zrow

    # ---- conv1 (3x3, pad=1, stride=1): fused pad + 3 MXU matmuls, M = Nb*H
    pad_ref[:, pl.ds(1, H), :] = x_ref[...]
    acc1 = jnp.zeros((M1, Wf), jnp.float32)
    for dy in range(3):
        slab = pad_ref[:, pl.ds(dy, H), :].reshape(M1, Wf)
        acc1 = acc1 + jnp.dot(slab, b1_ref[dy],
                              preferred_element_type=jnp.float32)
    h1 = jnp.maximum(acc1, 0.0)  # (Nb*H, W*C) f32

    # ---- conv2 (3x3, pad=1, stride=s) on relu(conv1), reusing the scratch
    pad_ref[:, pl.ds(1, H), :] = h1.astype(pad_ref.dtype).reshape(Nb, H, Wf)
    # Residual x[:, ::s, ::s] initializes the accumulator (one fewer VPU add).
    acc2 = xs_ref[...].astype(jnp.float32).reshape(M2, Wof)
    for dy in range(3):
        if stride == 1:
            slab = pad_ref[:, pl.ds(dy, H), :]
        else:
            slab = pad_ref[:, pl.ds(dy, Ho, stride), :]  # strided sublane read
        acc2 = acc2 + jnp.dot(slab.reshape(M2, Wf), b2_ref[dy],
                              preferred_element_type=jnp.float32)

    # ---- final ReLU + full-lane store
    out = jnp.maximum(acc2, 0.0)
    o_ref[...] = out.reshape(Nb, Ho, Wof).astype(o_ref.dtype)


def dblock_forward(x_nchw, w1_hwio, w2_hwio, stride=1, block_batch=None):
    """x_nchw: (N, C, H, W) f32; w*_hwio: (3, 3, C, C). Returns NCHW f32."""
    N, C, H, W = x_nchw.shape
    Ho = -(-H // stride)
    Wo = -(-W // stride)
    Wf, Wof = W * C, Wo * C
    cdt = jnp.bfloat16

    Nb = _pick_block_batch(N, H) if block_batch is None else block_batch
    assert N % Nb == 0, (N, Nb)
    G = N // Nb

    # Layout plumbing: NCHW -> lane-dense (N, H, W*C) bf16.
    # TODO(synk): keep consecutive DBlocks in this layout so the transposes are
    # paid once per network, not once per block.
    x_nhwc = jnp.transpose(x_nchw, (0, 2, 3, 1))
    x = x_nhwc.reshape(N, H, Wf).astype(cdt)
    b1 = _band_weights(w1_hwio, W, W, 1, cdt)            # (3, Wf, Wf)
    b2 = _band_weights(w2_hwio, W, Wo, stride, cdt)      # (3, Wf, Wof)

    in_specs = [
        pl.BlockSpec((Nb, H, Wf), lambda g: (g, 0, 0)),
        pl.BlockSpec((3, Wf, Wf), lambda g: (0, 0, 0)),
        pl.BlockSpec((3, Wf, Wof), lambda g: (0, 0, 0)),
    ]
    args = [x, b1, b2]
    if stride > 1:
        # Pre-subsampled residual: tiny extra DMA instead of a selection matmul.
        xs = x_nhwc[:, ::stride, ::stride, :].reshape(N, Ho, Wof).astype(cdt)
        in_specs.append(pl.BlockSpec((Nb, Ho, Wof), lambda g: (g, 0, 0)))
        args.append(xs)

    kernel = functools.partial(dblock_kernel, H=H, W=W, Ho=Ho, Wo=Wo, C=C,
                               stride=stride, Nb=Nb)
    out = pl.pallas_call(
        kernel,
        out_shape=jax.ShapeDtypeStruct((N, Ho, Wof), jnp.float32),
        grid_spec=pltpu.PrefetchScalarGridSpec(
            num_scalar_prefetch=0,
            grid=(G,),                                   # Nb images per step
            in_specs=in_specs,
            out_specs=pl.BlockSpec((Nb, Ho, Wof), lambda g: (g, 0, 0)),
            scratch_shapes=[pltpu.VMEM((Nb, H + 2, Wf), cdt)],
        ),
        compiler_params=pltpu.CompilerParams(dimension_semantics=("parallel",)),
    )(*args)
    return jnp.transpose(out.reshape(N, Ho, Wo, C), (0, 3, 1, 2))


def dblock_reference(x_nchw, w1_hwio, w2_hwio, stride=1, *,
                     quantize_like_kernel=False):
    """Pure-JAX reference matching the PyTorch forward pass.

    With quantize_like_kernel=True the inputs and the conv1 activation are
    rounded to bf16 exactly like the kernel's operands (accumulation stays f32
    on both sides), isolating the kernel's math from bf16 operand error.
    """
    if quantize_like_kernel:
        cast = lambda a: a.astype(jnp.bfloat16).astype(jnp.float32)
    else:
        cast = lambda a: a
    x = cast(jnp.transpose(x_nchw, (0, 2, 3, 1)).astype(jnp.float32))
    w1 = cast(w1_hwio.astype(jnp.float32))
    w2 = cast(w2_hwio.astype(jnp.float32))
    dn = ("NHWC", "HWIO", "NHWC")
    y1 = jax.lax.conv_general_dilated(x, w1, (1, 1), [(1, 1), (1, 1)],
                                      dimension_numbers=dn)
    y1 = cast(jnp.maximum(y1, 0.0))
    y2 = jax.lax.conv_general_dilated(y1, w2, (stride, stride),
                                      [(1, 1), (1, 1)], dimension_numbers=dn)
    out = jnp.maximum(x[:, ::stride, ::stride, :] + y2, 0.0)
    return jnp.transpose(out, (0, 3, 1, 2))


if __name__ == "__main__":
    key = jax.random.PRNGKey(0)
    kx, k1, k2 = jax.random.split(key, 3)

    # DBlock(filters=8); NCHW input like the torch module. W*C = 128 so every
    # lane of the flattened layout is used.
    N, C, H, W = 2, 8, 16, 16
    x = jax.random.normal(kx, (N, C, H, W), jnp.float32)
    # Conv2d weights (torch layout (C_out, C_in, 3, 3)) built directly as the
    # equivalent HWIO (3, 3, C_in, C_out).
    w1 = 0.1 * jax.random.normal(k1, (3, 3, C, C), jnp.float32)
    w2 = 0.1 * jax.random.normal(k2, (3, 3, C, C), jnp.float32)

    for stride in (1, 2):                    # stride=2 path now exercised too
        out = jax.block_until_ready(dblock_forward(x, w1, w2, stride=stride))
        ref_q = dblock_reference(x, w1, w2, stride=stride,
                                 quantize_like_kernel=True)
        ref_f = dblock_reference(x, w1, w2, stride=stride)
        assert out.shape == ref_f.shape, (stride, out.shape, ref_f.shape)
        # Tight check vs. the bf16-operand reference (same quantization).
        err_q = float(jnp.max(jnp.abs(out - ref_q)))
        assert jnp.allclose(out, ref_q, atol=1e-2, rtol=1e-2), (stride, err_q)
        # Loose check vs. pure-f32 module semantics (bf16 operand error only).
        err_f = float(jnp.max(jnp.abs(out - ref_f)))
        assert jnp.allclose(out, ref_f, atol=1e-1, rtol=1e-1), (stride, err_f)

    print("KERNEL_OK")
</pallas_src>

<mosaic_0001>
module attributes {stable_mosaic.version = 11 : i64} {
  func.func @dblock_kernel(%arg0: i32, %arg1: memref<1x16x128xbf16, #tpu.memory_space<vmem>>, %arg2: memref<3x128x128xbf16, #tpu.memory_space<vmem>>, %arg3: memref<3x128x128xbf16, #tpu.memory_space<vmem>>, %arg4: memref<1x16x128xf32, #tpu.memory_space<vmem>>, %arg5: memref<1x18x128xbf16, #tpu.memory_space<vmem>>) attributes {dimension_semantics = [#tpu.dimension_semantics<parallel>], iteration_bounds = array<i64: 2>, scalar_prefetch = 0 : i64, scratch_operands = 1 : i64, tpu.core_type = #tpu.core_type<tc>, window_params = [{transform_indices = @transform_0, window_bounds = array<i64: 1, 16, 128>}, {pipeline_mode = #tpu.pipeline_mode<synchronous>, transform_indices = @transform_1, window_bounds = array<i64: 3, 128, 128>}, {pipeline_mode = #tpu.pipeline_mode<synchronous>, transform_indices = @transform_2, window_bounds = array<i64: 3, 128, 128>}, {transform_indices = @transform_3, window_bounds = array<i64: 1, 16, 128>}]} {
    %cst = arith.constant 0.000000e+00 : bf16
    %0 = vector.broadcast %cst : bf16 to vector<1x1x128xbf16>
    %c0 = arith.constant 0 : index
    %c0_0 = arith.constant 0 : index
    %c0_1 = arith.constant 0 : index
    %1 = vector.load %arg5[%c0, %c0_0, %c0_1] : memref<1x18x128xbf16, #tpu.memory_space<vmem>>, vector<1x1x128xbf16>
    tpu.vector_store %arg5[%c0, %c0_0, %c0_1], %0 {strides = array<i32>} : memref<1x18x128xbf16, #tpu.memory_space<vmem>>, vector<1x1x128xbf16>,
    %c0_2 = arith.constant 0 : index
    %c17 = arith.constant 17 : index
    %c0_3 = arith.constant 0 : index
    %2 = vector.load %arg5[%c0_2, %c17, %c0_3] : memref<1x18x128xbf16, #tpu.memory_space<vmem>>, vector<1x1x128xbf16>
    tpu.vector_store %arg5[%c0_2, %c17, %c0_3], %0 {strides = array<i32>} : memref<1x18x128xbf16, #tpu.memory_space<vmem>>, vector<1x1x128xbf16>,
    %c0_4 = arith.constant 0 : index
    %c0_5 = arith.constant 0 : index
    %c0_6 = arith.constant 0 : index
    %3 = vector.load %arg1[%c0_4, %c0_5, %c0_6] : memref<1x16x128xbf16, #tpu.memory_space<vmem>>, vector<1x16x128xbf16>
    %c0_7 = arith.constant 0 : index
    %c1 = arith.constant 1 : index
    %c0_8 = arith.constant 0 : index
    %4 = vector.load %arg5[%c0_7, %c1, %c0_8] : memref<1x18x128xbf16, #tpu.memory_space<vmem>>, vector<1x16x128xbf16>
    tpu.vector_store %arg5[%c0_7, %c1, %c0_8], %3 {strides = array<i32>} : memref<1x18x128xbf16, #tpu.memory_space<vmem>>, vector<1x16x128xbf16>,
    %cst_9 = arith.constant 0.000000e+00 : f32
    %5 = vector.broadcast %cst_9 : f32 to vector<16x128xf32>
    %c0_10 = arith.constant 0 : index
    %c0_11 = arith.constant 0 : index
    %c0_12 = arith.constant 0 : index
    %6 = vector.load %arg5[%c0_10, %c0_11, %c0_12] : memref<1x18x128xbf16, #tpu.memory_space<vmem>>, vector<1x16x128xbf16>
    %7 = vector.shape_cast %6 : vector<1x16x128xbf16> to vector<16x128xbf16>
    %c0_13 = arith.constant 0 : index
    %c0_14 = arith.constant 0 : index
    %c0_15 = arith.constant 0 : index
    %8 = vector.load %arg2[%c0_13, %c0_14, %c0_15] : memref<3x128x128xbf16, #tpu.memory_space<vmem>>, vector<1x128x128xbf16>
    %9 = vector.shape_cast %8 : vector<1x128x128xbf16> to vector<128x128xbf16>
    %cst_16 = arith.constant dense<0.000000e+00> : vector<16x128xf32>
    %10 = tpu.matmul %7, %9, %cst_16 {dimension_numbers = #tpu.dot_dimension_numbers<[1], [0], [0], [1], [0, 0, 1, 1], [], []>} : vector<16x128xbf16>, vector<128x128xbf16>, vector<16x128xf32> -> vector<16x128xf32>
    %11 = arith.addf %5, %10 : vector<16x128xf32>
    %c0_17 = arith.constant 0 : index
    %c1_18 = arith.constant 1 : index
    %c0_19 = arith.constant 0 : index
    %12 = vector.load %arg5[%c0_17, %c1_18, %c0_19] : memref<1x18x128xbf16, #tpu.memory_space<vmem>>, vector<1x16x128xbf16>
    %13 = vector.shape_cast %12 : vector<1x16x128xbf16> to vector<16x128xbf16>
    %c1_20 = arith.constant 1 : index
    %c0_21 = arith.constant 0 : index
    %c0_22 = arith.constant 0 : index
    %14 = vector.load %arg2[%c1_20, %c0_21, %c0_22] : memref<3x128x128xbf16, #tpu.memory_space<vmem>>, vector<1x128x128xbf16>
    %15 = vector.shape_cast %14 : vector<1x128x128xbf16> to vector<128x128xbf16>
    %cst_23 = arith.constant dense<0.000000e+00> : vector<16x128xf32>
    %16 = tpu.matmul %13, %15, %cst_23 {dimension_numbers = #tpu.dot_dimension_numbers<[1], [0], [0], [1], [0, 0, 1, 1], [], []>} : vector<16x128xbf16>, vector<128x128xbf16>, vector<16x128xf32> -> vector<16x128xf32>
    %17 = arith.addf %11, %16 : vector<16x128xf32>
    %c0_24 = arith.constant 0 : index
    %c2 = arith.constant 2 : index
    %c0_25 = arith.constant 0 : index
    %18 = vector.load %arg5[%c0_24, %c2, %c0_25] : memref<1x18x128xbf16, #tpu.memory_space<vmem>>, vector<1x16x128xbf16>
    %19 = vector.shape_cast %18 : vector<1x16x128xbf16> to vector<16x128xbf16>
    %c2_26 = arith.constant 2 : index
    %c0_27 = arith.constant 0 : index
    %c0_28 = arith.constant 0 : index
    %20 = vector.load %arg2[%c2_26, %c0_27, %c0_28] : memref<3x128x128xbf16, #tpu.memory_space<vmem>>, vector<1x128x128xbf16>
    %21 = vector.shape_cast %20 : vector<1x128x128xbf16> to vector<128x128xbf16>
    %cst_29 = arith.constant dense<0.000000e+00> : vector<16x128xf32>
    %22 = tpu.matmul %19, %21, %cst_29 {dimension_numbers = #tpu.dot_dimension_numbers<[1], [0], [0], [1], [0, 0, 1, 1], [], []>} : vector<16x128xbf16>, vector<128x128xbf16>, vector<16x128xf32> -> vector<16x128xf32>
    %23 = arith.addf %17, %22 : vector<16x128xf32>
    %cst_30 = arith.constant 0.000000e+00 : f32
    %24 = vector.broadcast %cst_30 : f32 to vector<16x128xf32>
    %25 = arith.maximumf %23, %24 : vector<16x128xf32>
    %26 = arith.truncf %25 : vector<16x128xf32> to vector<16x128xbf16>
    %27 = vector.shape_cast %26 : vector<16x128xbf16> to vector<1x16x128xbf16>
    %c0_31 = arith.constant 0 : index
    %c1_32 = arith.constant 1 : index
    %c0_33 = arith.constant 0 : index
    %28 = vector.load %arg5[%c0_31, %c1_32, %c0_33] : memref<1x18x128xbf16, #tpu.memory_space<vmem>>, vector<1x16x128xbf16>
    tpu.vector_store %arg5[%c0_31, %c1_32, %c0_33], %27 {strides = array<i32>} : memref<1x18x128xbf16, #tpu.memory_space<vmem>>, vector<1x16x128xbf16>,
    %c0_34 = arith.constant 0 : index
    %c0_35 = arith.constant 0 : index
    %c0_36 = arith.constant 0 : index
    %29 = vector.load %arg1[%c0_34, %c0_35, %c0_36] : memref<1x16x128xbf16, #tpu.memory_space<vmem>>, vector<1x16x128xbf16>
    %30 = arith.extf %29 : vector<1x16x128xbf16> to vector<1x16x128xf32>
    %31 = vector.shape_cast %30 : vector<1x16x128xf32> to vector<16x128xf32>
    %c0_37 = arith.constant 0 : index
    %c0_38 = arith.constant 0 : index
    %c0_39 = arith.constant 0 : index
    %32 = vector.load %arg5[%c0_37, %c0_38, %c0_39] : memref<1x18x128xbf16, #tpu.memory_space<vmem>>, vector<1x16x128xbf16>
    %33 = vector.shape_cast %32 : vector<1x16x128xbf16> to vector<16x128xbf16>
    %c0_40 = arith.constant 0 : index
    %c0_41 = arith.constant 0 : index
    %c0_42 = arith.constant 0 : index
    %34 = vector.load %arg3[%c0_40, %c0_41, %c0_42] : memref<3x128x128xbf16, #tpu.memory_space<vmem>>, vector<1x128x128xbf16>
    %35 = vector.shape_cast %34 : vector<1x128x128xbf16> to vector<128x128xbf16>
    %cst_43 = arith.constant dense<0.000000e+00> : vector<16x128xf32>
    %36 = tpu.matmul %33, %35, %cst_43 {dimension_numbers = #tpu.dot_dimension_numbers<[1], [0], [0], [1], [0, 0, 1, 1], [], []>} : vector<16x128xbf16>, vector<128x128xbf16>, vector<16x128xf32> -> vector<16x128xf32>
    %37 = arith.addf %31, %36 : vector<16x128xf32>
    %c0_44 = arith.constant 0 : index
    %c1_45 = arith.constant 1 : index
    %c0_46 = arith.constant 0 : index
    %38 = vector.load %arg5[%c0_44, %c1_45, %c0_46] : memref<1x18x128xbf16, #tpu.memory_space<vmem>>, vector<1x16x128xbf16>
    %39 = vector.shape_cast %38 : vector<1x16x128xbf16> to vector<16x128xbf16>
    %c1_47 = arith.constant 1 : index
    %c0_48 = arith.constant 0 : index
    %c0_49 = arith.constant 0 : index
    %40 = vector.load %arg3[%c1_47, %c0_48, %c0_49] : memref<3x128x128xbf16, #tpu.memory_space<vmem>>, vector<1x128x128xbf16>
    %41 = vector.shape_cast %40 : vector<1x128x128xbf16> to vector<128x128xbf16>
    %cst_50 = arith.constant dense<0.000000e+00> : vector<16x128xf32>
    %42 = tpu.matmul %39, %41, %cst_50 {dimension_numbers = #tpu.dot_dimension_numbers<[1], [0], [0], [1], [0, 0, 1, 1], [], []>} : vector<16x128xbf16>, vector<128x128xbf16>, vector<16x128xf32> -> vector<16x128xf32>
    %43 = arith.addf %37, %42 : vector<16x128xf32>
    %c0_51 = arith.constant 0 : index
    %c2_52 = arith.constant 2 : index
    %c0_53 = arith.constant 0 : index
    %44 = vector.load %arg5[%c0_51, %c2_52, %c0_53] : memref<1x18x128xbf16, #tpu.memory_space<vmem>>, vector<1x16x128xbf16>
    %45 = vector.shape_cast %44 : vector<1x16x128xbf16> to vector<16x128xbf16>
    %c2_54 = arith.constant 2 : index
    %c0_55 = arith.constant 0 : index
    %c0_56 = arith.constant 0 : index
    %46 = vector.load %arg3[%c2_54, %c0_55, %c0_56] : memref<3x128x128xbf16, #tpu.memory_space<vmem>>, vector<1x128x128xbf16>
    %47 = vector.shape_cast %46 : vector<1x128x128xbf16> to vector<128x128xbf16>
    %cst_57 = arith.constant dense<0.000000e+00> : vector<16x128xf32>
    %48 = tpu.matmul %45, %47, %cst_57 {dimension_numbers = #tpu.dot_dimension_numbers<[1], [0], [0], [1], [0, 0, 1, 1], [], []>} : vector<16x128xbf16>, vector<128x128xbf16>, vector<16x128xf32> -> vector<16x128xf32>
    %49 = arith.addf %43, %48 : vector<16x128xf32>
    %cst_58 = arith.constant 0.000000e+00 : f32
    %50 = vector.broadcast %cst_58 : f32 to vector<16x128xf32>
    %51 = arith.maximumf %49, %50 : vector<16x128xf32>
    %52 = vector.shape_cast %51 : vector<16x128xf32> to vector<1x16x128xf32>
    %c0_59 = arith.constant 0 : index
    %c0_60 = arith.constant 0 : index
    %c0_61 = arith.constant 0 : index
    %53 = vector.load %arg4[%c0_59, %c0_60, %c0_61] : memref<1x16x128xf32, #tpu.memory_space<vmem>>, vector<1x16x128xf32>
    tpu.vector_store %arg4[%c0_59, %c0_60, %c0_61], %52 {strides = array<i32>} : memref<1x16x128xf32, #tpu.memory_space<vmem>>, vector<1x16x128xf32>,
    return
  }
  func.func @transform_0(%arg0: i32) -> (i32, i32, i32) {
    %c0_i32 = arith.constant 0 : i32
    %c0_i32_0 = arith.constant 0 : i32
    %c0_i32_1 = arith.constant 0 : i32
    return %arg0, %c0_i32, %c0_i32_0 : i32, i32, i32
  }
  func.func @transform_1(%arg0: i32) -> (i32, i32, i32) {
    %c0_i32 = arith.constant 0 : i32
    %c0_i32_0 = arith.constant 0 : i32
    %c0_i32_1 = arith.constant 0 : i32
    %c0_i32_2 = arith.constant 0 : i32
    return %c0_i32, %c0_i32_0, %c0_i32_1 : i32, i32, i32
  }
  func.func @transform_2(%arg0: i32) -> (i32, i32, i32) {
    %c0_i32 = arith.constant 0 : i32
    %c0_i32_0 = arith.constant 0 : i32
    %c0_i32_1 = arith.constant 0 : i32
    %c0_i32_2 = arith.constant 0 : i32
    return %c0_i32, %c0_i32_0, %c0_i32_1 : i32, i32, i32
  }
  func.func @transform_3(%arg0: i32) -> (i32, i32, i32) {
    %c0_i32 = arith.constant 0 : i32
    %c0_i32_0 = arith.constant 0 : i32
    %c0_i32_1 = arith.constant 0 : i32
    return %arg0, %c0_i32, %c0_i32_0 : i32, i32, i32
  }
}

</mosaic_0001>

<llo_original>
// kernel: tpu_custom_call.1
$region0: #{tpu_custom_call.1}
  #allocation0 [shape = 'u32[]', space=smem, size = 0x4, offset = 0x4, fixed_abs, tag = 'smem constant byte address 0x4 - core index']
  #allocation1 [shape = 'u32[144,128]{1,0:T(1,128)}', space=vmem, size = 0x12000, scoped, tag = 'internal scratch']
  #allocation2 [shape = 'bf16[1,18,128]{2,1,0:T(8,128)(2,1)}', space=vmem, size = 0x1800, scoped, tag = 'scratch operand']
  %s0 = inlined_call_operand.hbm [shape: bf16[2,16,128], index: 0, kind: input, shape index: {}]
  %s1 = inlined_call_operand.hbm [shape: bf16[3,128,128], index: 1, kind: input, shape index: {}]
  %s2 = inlined_call_operand.hbm [shape: bf16[3,128,128], index: 2, kind: input, shape index: {}]
  %s3 = inlined_call_operand.hbm [shape: f32[2,16,128], index: 3, kind: output, shape index: {}]
  %s4 = sld [smem:[#allocation0]]
  $region57: #{tpu_custom_call.1} parent=0
    _
  %s6 = ssub.s32 1, %s4
  %s7 = scalar_select 0, %s6, %s4
  $region1: #{tpu_custom_call.1} parent=0
    #allocation3 [shape = 'u8[8192]{0}', space=vmem, size = 0x2000, scoped, tag = 'input window, operand 0']
    #allocation4 [shape = 's32[2]{0}', space=sflag, size = 0x8, scoped, tag = 'scoped memory for tpu_custom_call.1']
    #allocation5 [shape = 's32[2]{0}', space=sflag, size = 0x8, scoped, tag = 'scoped memory for tpu_custom_call.1']
    #allocation6 [shape = 'u8[98304]{0}', space=vmem, size = 0x18000, scoped, tag = 'input window, operand 1, single buffered']
    #allocation7 [shape = 's32[1]{0}', space=sflag, size = 0x4, scoped, tag = 'scoped memory for tpu_custom_call.1']
    #allocation8 [shape = 'u8[98304]{0}', space=vmem, size = 0x18000, scoped, tag = 'input window, operand 2, single buffered']
    #allocation9 [shape = 'u8[16384]{0}', space=vmem, size = 0x4000, scoped, tag = 'output window, operand 0']
    %8 = vsyncpa [#allocation4], 0
    %s9 = scalar_lea.sflag [#allocation4], 1
    %10 = vsyncpa %s9, 0
    %11 = vsyncpa [#allocation7], 0
    %12 = vsyncpa [#allocation5], 0
    %s13 = scalar_lea.sflag [#allocation5], 1
    %14 = vsyncpa %s13, 0
    loop: start=0, step=1, limit=4
    $region2: #{tpu_custom_call.1} parent=1 // loop_pre_header
      _
    $region3: #{tpu_custom_call.1} parent=1 // loop_header
      %s16 = sphi 0, %s20
      %p17 = scmp.ge.s32.totalorder %s16, 4
      %s26 = sphi 0, %s28
      %s29 = sphi 0, %s26
      %s30 = sphi 0, %s29
      %s46 = sphi 0, %s30
      %s50 = sphi 0, %s50
      %s52 = sphi 0, %s50
      %s53 = sphi 0, %s52
      %s67 = sphi 0, %s53
      %s71 = sphi 0, %s71
      %s73 = sphi 0, %s71
      %s74 = sphi 0, %s73
      %s88 = sphi 0, %s74
      %s94 = sphi 0, %s96
      %s97 = sphi 0, %s94
      %s98 = sphi 0, %s97
      %s114 = sphi 0, %s98
    $region4: #{tpu_custom_call.1} parent=1 // loop_header_branch
      %19 = sbr.rel (%p17) target = $region8
    $region5: #{tpu_custom_call.1} parent=1 // loop_body
      %s21 = ssub.s32 %s16, 1
      %s22 = ssub.s32 %s16, 2
      %s23 = sadd.s32 %s16, 1
      %s24 = ssub.s32 %s16, %s23
      %p25 = scmp.eq.s32.totalorder %s24, 0
      %s27 = sadd.s32 %s26, 1
      %s28 = scalar_select %p25, %s26, %s27
      %p31 = pneg %p25
      %p32 = scmp.eq.s32.totalorder %s16, 1
      %p33 = por %p31, %p32
      %p34 = scmp.ne.s32.totalorder %s26, %s29
      %p35 = scmp.eq.s32.totalorder %s16, 0
      %p36 = por %p34, %p35
      %p37 = scmp.ne.s32.totalorder %s26, %s29
      %p38 = scmp.eq.s32.totalorder %s21, 1
      %p39 = por %p37, %p38
      %p40 = scmp.ne.s32.totalorder %s29, %s30
      %p41 = scmp.eq.s32.totalorder %s21, 0
      %p42 = por %p40, %p41
      %p43 = scmp.ne.s32.totalorder %s29, %s30
      %p44 = scmp.eq.s32.totalorder %s22, 1
      %p45 = por %p43, %p44
      %p47 = scmp.ne.s32.totalorder %s30, %s46
      %p48 = scmp.eq.s32.totalorder %s22, 0
      %p49 = por %p47, %p48
      %s51 = sadd.s32 %s50, 1
      %p54 = scmp.eq.s32.totalorder %s16, 1
      %p55 = scmp.ne.s32.totalorder %s50, %s52
      %p56 = scmp.eq.s32.totalorder %s16, 0
      %p57 = por %p55, %p56
      %p58 = scmp.ne.s32.totalorder %s50, %s52
      %p59 = scmp.eq.s32.totalorder %s21, 1
      %p60 = por %p58, %p59
      %p61 = scmp.ne.s32.totalorder %s52, %s53
      %p62 = scmp.eq.s32.totalorder %s21, 0
      %p63 = por %p61, %p62
      %p64 = scmp.ne.s32.totalorder %s52, %s53
      %p65 = scmp.eq.s32.totalorder %s22, 1
      %p66 = por %p64, %p65
      %p68 = scmp.ne.s32.totalorder %s53, %s67
      %p69 = scmp.eq.s32.totalorder %s22, 0
      %p70 = por %p68, %p69
      %s72 = sadd.s32 %s71, 1
      %p75 = scmp.eq.s32.totalorder %s16, 1
      %p76 = scmp.ne.s32.totalorder %s71, %s73
      %p77 = scmp.eq.s32.totalorder %s16, 0
      %p78 = por %p76, %p77
      %p79 = scmp.ne.s32.totalorder %s71, %s73
      %p80 = scmp.eq.s32.totalorder %s21, 1
      %p81 = por %p79, %p80
      %p82 = scmp.ne.s32.totalorder %s73, %s74
      %p83 = scmp.eq.s32.totalorder %s21, 0
      %p84 = por %p82, %p83
      %p85 = scmp.ne.s32.totalorder %s73, %s74
      %p86 = scmp.eq.s32.totalorder %s22, 1
      %p87 = por %p85, %p86
      %p89 = scmp.ne.s32.totalorder %s74, %s88
      %p90 = scmp.eq.s32.totalorder %s22, 0
      %p91 = por %p89, %p90
      %s92 = ssub.s32 %s16, %s23
      %p93 = scmp.eq.s32.totalorder %s92, 0
      %s95 = sadd.s32 %s94, 1
      %s96 = scalar_select %p93, %s94, %s95
      %p99 = pneg %p93
      %p100 = scmp.eq.s32.totalorder %s16, 1
      %p101 = por %p99, %p100
      %p102 = scmp.ne.s32.totalorder %s94, %s97
      %p103 = scmp.eq.s32.totalorder %s16, 0
      %p104 = por %p102, %p103
      %p105 = scmp.ne.s32.totalorder %s94, %s97
      %p106 = scmp.eq.s32.totalorder %s21, 1
      %p107 = por %p105, %p106
      %p108 = scmp.ne.s32.totalorder %s97, %s98
      %p109 = scmp.eq.s32.totalorder %s21, 0
      %p110 = por %p108, %p109
      %p111 = scmp.ne.s32.totalorder %s97, %s98
      %p112 = scmp.eq.s32.totalorder %s22, 1
      %p113 = por %p111, %p112
      %p115 = scmp.ne.s32.totalorder %s98, %s114
      %p116 = scmp.eq.s32.totalorder %s22, 0
      %p117 = por %p115, %p116
      %p118 = scmp.le.s32.totalorder 1, %s16
      %p119 = scmp.lt.s32.totalorder %s16, 3
      %p120 = pnand %p118, %p119
      %p121 = pneg %p120
      // Predicated region
      $region9: #{tpu_custom_call.1} parent=5 // pred_check
        _
      $region10: #{tpu_custom_call.1} parent=5 // pred_check_branch
        %123 = sbr.rel (%p120) target = $region12
      $region11: #{tpu_custom_call.1} parent=5 // pred_region
        %s124 = ssub.s32 %s16, 1
        // Predicated region
        $region13: #{tpu_custom_call.1} parent=11 // pred_check
          %p125 = pneg %p63
        $region14: #{tpu_custom_call.1} parent=11 // pred_check_branch
          %127 = sbr.rel (%p125) target = $region16
        $region15: #{tpu_custom_call.1} parent=11 // pred_region
          %s129 = ssub.s32 3072, 3072
          %130 = vsyncadd [#allocation7], %s129
          %s131 = sshll.u32 [#allocation6], 4
          %s132 = int_to_ptr.vmem [resolvable:$true] %s131
          %137 = dma.hbm_to_vmem [thread:$0]  %s1, 3072, %s132, [#allocation7], 64, 64, 4
        $region16: #{tpu_custom_call.1} parent=11 // pred_fallthru
          _
        // Predicated region
        $region17: #{tpu_custom_call.1} parent=11 // pred_check
          %p138 = pneg %p84
        $region18: #{tpu_custom_call.1} parent=11 // pred_check_branch
          %140 = sbr.rel (%p138) target = $region20
        $region19: #{tpu_custom_call.1} parent=11 // pred_region
          %s142 = ssub.s32 3072, 3072
          %143 = vsyncadd [#allocation7], %s142
          %s144 = sshll.u32 [#allocation8], 4
          %s145 = int_to_ptr.vmem [resolvable:$true] %s144
          %150 = dma.hbm_to_vmem [thread:$0]  %s2, 3072, %s145, [#allocation7], 64, 64, 4
        $region20: #{tpu_custom_call.1} parent=11 // pred_fallthru
          _
      $region12: #{tpu_custom_call.1} parent=5 // pred_fallthru
        _
      %p151 = scmp.lt.s32.totalorder %s16, 2
      // Predicated region
      $region21: #{tpu_custom_call.1} parent=5 // pred_check
        %p152 = pneg %p151
      $region22: #{tpu_custom_call.1} parent=5 // pred_check_branch
        %154 = sbr.rel (%p152) target = $region24
      $region23: #{tpu_custom_call.1} parent=5 // pred_region
        // Predicated region
        $region25: #{tpu_custom_call.1} parent=23 // pred_check
          %p155 = pneg %p36
        $region26: #{tpu_custom_call.1} parent=23 // pred_check_branch
          %157 = sbr.rel (%p155) target = $region28
        $region27: #{tpu_custom_call.1} parent=23 // pred_region
          %s158 = sand.u32 %s26, 1
          %s159 = scalar_lea.sflag [#allocation4], %s158
          %s160 = sand.u32 %s26, 1
          %s161 = smul.addr %s160, 8
          %s162 = scalar_lea.vmem [#allocation3], %s161
          %s164 = ssub.s32 128, 128
          %165 = vsyncadd %s159, %s164
          %s166 = smul.addr %s16, 2
          %s167 = smul.addr %s166, 64
          %s168 = scalar_lea.hbm %s0, %s167
          %s169 = sshll.u32 %s162, 4
          %s170 = int_to_ptr.vmem [resolvable:$true] %s169
          %175 = dma.hbm_to_vmem [thread:$0]  %s168, 128, %s170, %s159, 64, 64, 4
        $region28: #{tpu_custom_call.1} parent=23 // pred_fallthru
          _
      $region24: #{tpu_custom_call.1} parent=5 // pred_fallthru
        _
      %p176 = scmp.le.s32.totalorder 1, %s16
      %p177 = scmp.lt.s32.totalorder %s16, 3
      %p178 = pnand %p176, %p177
      %p179 = pneg %p178
      // Predicated region
      $region29: #{tpu_custom_call.1} parent=5 // pred_check
        _
      $region30: #{tpu_custom_call.1} parent=5 // pred_check_branch
        %181 = sbr.rel (%p178) target = $region32
      $region31: #{tpu_custom_call.1} parent=5 // pred_region
        %s182 = ssub.s32 %s16, 1
        %s183 = sand.u32 %s29, 1
        %s184 = scalar_lea.sflag [#allocation4], %s183
        %s185 = sand.u32 %s29, 1
        %s186 = smul.addr %s185, 8
        %s187 = scalar_lea.vmem [#allocation3], %s186
        // Predicated region
        $region33: #{tpu_custom_call.1} parent=31 // pred_check
          %p188 = pneg %p42
        $region34: #{tpu_custom_call.1} parent=31 // pred_check_branch
          %190 = sbr.rel (%p188) target = $region36
        $region35: #{tpu_custom_call.1} parent=31 // pred_region
          %191 = dma.done %s184, 128
        $region36: #{tpu_custom_call.1} parent=31 // pred_fallthru
          _
        // Predicated region
        $region37: #{tpu_custom_call.1} parent=31 // pred_check
          %p192 = pneg %p63
        $region38: #{tpu_custom_call.1} parent=31 // pred_check_branch
          %194 = sbr.rel (%p192) target = $region40
        $region39: #{tpu_custom_call.1} parent=31 // pred_region
          %195 = dma.done [#allocation7], 3072
        $region40: #{tpu_custom_call.1} parent=31 // pred_fallthru
          _
        // Predicated region
        $region41: #{tpu_custom_call.1} parent=31 // pred_check
          %p196 = pneg %p84
        $region42: #{tpu_custom_call.1} parent=31 // pred_check_branch
          %198 = sbr.rel (%p196) target = $region44
        $region43: #{tpu_custom_call.1} parent=31 // pred_region
          %199 = dma.done [#allocation7], 3072
        $region44: #{tpu_custom_call.1} parent=31 // pred_fallthru
          _
        %s200 = sand.u32 %s29, 1
        %s201 = scalar_lea.sflag [#allocation4], %s200
        %s202 = sand.u32 %s29, 1
        %s203 = smul.addr %s202, 8
        %s204 = scalar_lea.vmem [#allocation3], %s203
        %p205 = pneg %p42
        %p206 = pneg %p39
        %p207 = pneg %p63
        %p208 = pneg %p60
        %p209 = pneg %p84
        %p210 = pneg %p81
        %p211 = pneg %p110
        %p212 = pneg %p107
        %s213 = sand.u32 %s97, 1
        %s214 = scalar_lea.sflag [#allocation5], %s213
        %s215 = sand.u32 %s97, 1
        %s216 = smul.addr %s215, 16
        %s217 = scalar_lea.vmem [#allocation9], %s216
        %vm219 = vcmask 1040384
        %vm220 = vsmask.f32 256
        %vm221 = vmand %vm219, %vm220
        %v222 = vld [vmem:[#allocation2] sm:$0x1]
        %v223 = vsel %vm221, 0, %v222
        %224 = vst [vmem:[#allocation2] sm:$0x1] %v223
        %vm225 = vsmask.f32 7938
        %vm226 = vmand %vm219, %vm225
        %v227 = vld [vmem:[#allocation2 + $0x8] sm:$0x1]
        %v228 = vsel %vm226, 0, %v227
        %229 = vst [vmem:[#allocation2 + $0x8] sm:$0x1] %v228
        %v230 = vld [vmem:[%s187] sm:$0xf]
        %v231 = vld [vmem:[%s187 + $0x4] sm:$0xf]
        %vm232 = vsmask.f32 4368
        %vm233 = vmor %vm220, %vm232
        %v235 = vshrl.u32 %v230, 16
        %v237 = vrot.slane %v235, 7
        %v238 = vshll.u32 %v230, 16
        %v240 = vor.u32 %v237, %v238
        %v241 = vrot.slane %v237, 4
        %v243 = vshrl.u32 %v231, 16
        %v245 = vrot.slane %v243, 7
        %v246 = vshll.u32 %v231, 16
        %v248 = vor.u32 %v245, %v246
        %v249 = vsel %vm233, %v241, %v248
        %v250 = vrot.slane %v245, 4
        %vm254 = vcmask 1043456
        %vm255 = vmand %vm254, %vm225
        %v256 = vld [vmem:[#allocation2] sm:$0xf]
        %v257 = vsel %vm255, %v240, %v256
        %258 = vst [vmem:[#allocation2] sm:$0xf] %v257
        %259 = vst [vmem:[#allocation2 + $0x4] sm:$0xf] %v249
        %v260 = vld [vmem:[#allocation2 + $0x8] sm:$0x1]
        %v261 = vsel %vm221, %v250, %v260
        %262 = vst [vmem:[#allocation2 + $0x8] sm:$0x1] %v261
        %v263 = vld [vmem:[#allocation2] sm:$0xf]
        %v264 = vld [vmem:[#allocation2 + $0x4] sm:$0xf]
        %v265 = vld [vmem:[#allocation6] sm:$0xf]
        %v266 = vld [vmem:[#allocation6 + $0x4] sm:$0xf]
        %v267 = vld [vmem:[#allocation6 + $0x8] sm:$0xf]
        %v268 = vld [vmem:[#allocation6 + $0xc] sm:$0xf]
        %v269 = vld [vmem:[#allocation6 + $0x10] sm:$0xf]
        %v270 = vld [vmem:[#allocation6 + $0x14] sm:$0xf]
        %v271 = vld [vmem:[#allocation6 + $0x18] sm:$0xf]
        %v272 = vld [vmem:[#allocation6 + $0x1c] sm:$0xf]
        %v273 = vld [vmem:[#allocation6 + $0x20] sm:$0xf]
        %v274 = vld [vmem:[#allocation6 + $0x24] sm:$0xf]
        %v275 = vld [vmem:[#allocation6 + $0x28] sm:$0xf]
        %v276 = vld [vmem:[#allocation6 + $0x2c] sm:$0xf]
        %v277 = vld [vmem:[#allocation6 + $0x30] sm:$0xf]
        %v278 = vld [vmem:[#allocation6 + $0x34] sm:$0xf]
        %v279 = vld [vmem:[#allocation6 + $0x38] sm:$0xf]
        %v280 = vld [vmem:[#allocation6 + $0x3c] sm:$0xf]
        %v281 = vld [vmem:[#allocation2 + $0x8] sm:$0x1]
        %s282 = scalar_lea.vmem [#allocation6], 64
        %v283 = vld [vmem:[%s282] sm:$0xf]
        %v284 = vld [vmem:[%s282 + $0x4] sm:$0xf]
        %v285 = vld [vmem:[%s282 + $0x8] sm:$0xf]
        %v286 = vld [vmem:[%s282 + $0xc] sm:$0xf]
        %v287 = vld [vmem:[%s282 + $0x10] sm:$0xf]
        %v288 = vld [vmem:[%s282 + $0x14] sm:$0xf]
        %v289 = vld [vmem:[%s282 + $0x18] sm:$0xf]
        %v290 = vld [vmem:[%s282 + $0x1c] sm:$0xf]
        %v291 = vld [vmem:[%s282 + $0x20] sm:$0xf]
        %v292 = vld [vmem:[%s282 + $0x24] sm:$0xf]
        %v293 = vld [vmem:[%s282 + $0x28] sm:$0xf]
        %v294 = vld [vmem:[%s282 + $0x2c] sm:$0xf]
        %v295 = vld [vmem:[%s282 + $0x30] sm:$0xf]
        %v296 = vld [vmem:[%s282 + $0x34] sm:$0xf]
        %v297 = vld [vmem:[%s282 + $0x38] sm:$0xf]
        %v298 = vld [vmem:[%s282 + $0x3c] sm:$0xf]
        %v302 = vunpack.c.l.b16 %v263
        %v303 = vunpack.c.l.b16 %v264
        %v304 = vunpack.c.l.b16 %v281
        %v305 = vpack.c.b16 %v303, %v302
        %v306 = vpack.c.b16 %v304, %v304
        %vm307 = vsmask.f32 7424
        %v309 = vshrl.u32 %v305, 16
        %v311 = vshll.u32 %v305, 16
        %v313 = vrot.slane %v311, 1
        %v314 = vor.u32 %v309, %v313
        %v316 = vshll.u32 %v306, 16
        %v318 = vrot.slane %v316, 1
        %v319 = vsel %vm307, %v314, %v318
        %v337 = vunpack.c.l.b16 %v283
        %v338 = vunpack.c.l.b16 %v284
        %v339 = vunpack.c.l.b16 %v285
        %v340 = vunpack.c.l.b16 %v286
        %v341 = vunpack.c.l.b16 %v287
        %v342 = vunpack.c.l.b16 %v288
        %v343 = vunpack.c.l.b16 %v289
        %v344 = vunpack.c.l.b16 %v290
        %v345 = vunpack.c.l.b16 %v291
        %v346 = vunpack.c.l.b16 %v292
        %v347 = vunpack.c.l.b16 %v293
        %v348 = vunpack.c.l.b16 %v294
        %v349 = vunpack.c.l.b16 %v295
        %v350 = vunpack.c.l.b16 %v296
        %v351 = vunpack.c.l.b16 %v297
        %v352 = vunpack.c.l.b16 %v298
        %v353 = vpack.c.b16 %v338, %v337
        %v354 = vpack.c.b16 %v340, %v339
        %v355 = vpack.c.b16 %v342, %v341
        %v356 = vpack.c.b16 %v344, %v343
        %v357 = vpack.c.b16 %v346, %v345
        %v358 = vpack.c.b16 %v348, %v347
        %v359 = vpack.c.b16 %v350, %v349
        %v360 = vpack.c.b16 %v352, %v351
        %369 = vmatprep.subr.bf16.mxu0 0
        %370 = vmatpush1.bf16.msra.mxu0 %v360
        %371 = vmatprep.subr.bf16.mxu0 0
        %372 = vmatpush1.bf16.msra.mxu0 %v359
        %373 = vmatprep.subr.bf16.mxu0 0
        %374 = vmatpush1.bf16.msra.mxu0 %v358
        %375 = vmatprep.subr.bf16.mxu0 0
        %376 = vmatpush1.bf16.msra.mxu0 %v357
        %377 = vmatprep.subr.bf16.mxu0 0
        %378 = vmatpush1.bf16.msra.mxu0 %v356
        %379 = vmatprep.subr.bf16.mxu0 0
        %380 = vmatpush1.bf16.msra.mxu0 %v355
        %381 = vmatprep.subr.bf16.mxu0 0
        %382 = vmatpush1.bf16.msra.mxu0 %v354
        %383 = vmatprep.subr.bf16.mxu0 0
        %384 = vmatpush1.bf16.msra.mxu0 %v353
        %385 = vmatprep.subr.bf16.mxu0 0
        %386 = vmatpush2.bf16.msra.mxu0 0
        %387 = vmatprep.subr.bf16.mxu0 0
        %388 = vmatpush2.bf16.msra.mxu0 0
        %389 = vmatprep.subr.bf16.mxu0 0
        %390 = vmatpush2.bf16.msra.mxu0 0
        %391 = vmatprep.subr.bf16.mxu0 0
        %392 = vmatpush2.bf16.msra.mxu0 0
        %393 = vmatprep.subr.bf16.mxu0 0
        %394 = vmatpush2.bf16.msra.mxu0 0
        %395 = vmatprep.subr.bf16.mxu0 0
        %396 = vmatpush2.bf16.msra.mxu0 0
        %397 = vmatprep.subr.bf16.mxu0 0
        %398 = vmatpush2.bf16.msra.mxu0 0
        %399 = vmatprep.subr.bf16.mxu0 0
        %400 = vmatpush2.bf16.msra.mxu0 0
        %401 = vmatprep.mubr.bf16.mxu0 0
        %402 = vmatmul.mubr.bf16.gmra.mxu0 %v319
        %v403 = vpop.f32.mrf.mxu0
        %v404 = vadd.f32 0.0, %v403
        %v405 = vpop.f32.mrf.mxu0
        %v406 = vpop.f32.mrf.mxu0
        %v407 = vadd.f32 0.0, %v406
        %v408 = vpop.f32.mrf.mxu0
        %409 = vdwg.mxu0
        %v427 = vunpack.c.l.b16 %v265
        %v428 = vunpack.c.l.b16 %v266
        %v429 = vunpack.c.l.b16 %v267
        %v430 = vunpack.c.l.b16 %v268
        %v431 = vunpack.c.l.b16 %v269
        %v432 = vunpack.c.l.b16 %v270
        %v433 = vunpack.c.l.b16 %v271
        %v434 = vunpack.c.l.b16 %v272
        %v435 = vunpack.c.l.b16 %v273
        %v436 = vunpack.c.l.b16 %v274
        %v437 = vunpack.c.l.b16 %v275
        %v438 = vunpack.c.l.b16 %v276
        %v439 = vunpack.c.l.b16 %v277
        %v440 = vunpack.c.l.b16 %v278
        %v441 = vunpack.c.l.b16 %v279
        %v442 = vunpack.c.l.b16 %v280
        %v443 = vpack.c.b16 %v428, %v427
        %v444 = vpack.c.b16 %v430, %v429
        %v445 = vpack.c.b16 %v432, %v431
        %v446 = vpack.c.b16 %v434, %v433
        %v447 = vpack.c.b16 %v436, %v435
        %v448 = vpack.c.b16 %v438, %v437
        %v449 = vpack.c.b16 %v440, %v439
        %v450 = vpack.c.b16 %v442, %v441
        %459 = vmatprep.subr.bf16.mxu0 0
        %460 = vmatpush1.bf16.msra.mxu0 %v450
        %461 = vmatprep.subr.bf16.mxu0 0
        %462 = vmatpush1.bf16.msra.mxu0 %v449
        %463 = vmatprep.subr.bf16.mxu0 0
        %464 = vmatpush1.bf16.msra.mxu0 %v448
        %465 = vmatprep.subr.bf16.mxu0 0
        %466 = vmatpush1.bf16.msra.mxu0 %v447
        %467 = vmatprep.subr.bf16.mxu0 0
        %468 = vmatpush1.bf16.msra.mxu0 %v446
        %469 = vmatprep.subr.bf16.mxu0 0
        %470 = vmatpush1.bf16.msra.mxu0 %v445
        %471 = vmatprep.subr.bf16.mxu0 0
        %472 = vmatpush1.bf16.msra.mxu0 %v444
        %473 = vmatprep.subr.bf16.mxu0 0
        %474 = vmatpush1.bf16.msra.mxu0 %v443
        %475 = vmatprep.subr.bf16.mxu0 0
        %476 = vmatpush2.bf16.msra.mxu0 0
        %477 = vmatprep.subr.bf16.mxu0 0
        %478 = vmatpush2.bf16.msra.mxu0 0
        %479 = vmatprep.subr.bf16.mxu0 0
        %480 = vmatpush2.bf16.msra.mxu0 0
        %481 = vmatprep.subr.bf16.mxu0 0
        %482 = vmatpush2.bf16.msra.mxu0 0
        %483 = vmatprep.subr.bf16.mxu0 0
        %484 = vmatpush2.bf16.msra.mxu0 0
        %485 = vmatprep.subr.bf16.mxu0 0
        %486 = vmatpush2.bf16.msra.mxu0 0
        %487 = vmatprep.subr.bf16.mxu0 0
        %488 = vmatpush2.bf16.msra.mxu0 0
        %489 = vmatprep.subr.bf16.mxu0 0
        %490 = vmatpush2.bf16.msra.mxu0 0
        %491 = vmatprep.mubr.bf16.mxu0 0
        %492 = vmatmul.mubr.bf16.gmra.mxu0 %v305
        %v493 = vpop.f32.mrf.mxu0
        %v494 = vadd.f32 %v404, %v493
        %v495 = vpop.f32.mrf.mxu0
        %v496 = vpop.f32.mrf.mxu0
        %v497 = vadd.f32 %v407, %v496
        %v498 = vpop.f32.mrf.mxu0
        %499 = vdwg.mxu0
        %v500 = vld [vmem:[#allocation2] sm:$0xe]
        %s501 = scalar_lea.vmem [#allocation6], 128
        %v502 = vld [vmem:[%s501] sm:$0xf]
        %v503 = vld [vmem:[%s501 + $0x4] sm:$0xf]
        %v504 = vld [vmem:[%s501 + $0x8] sm:$0xf]
        %v505 = vld [vmem:[%s501 + $0xc] sm:$0xf]
        %v506 = vld [vmem:[%s501 + $0x10] sm:$0xf]
        %v507 = vld [vmem:[%s501 + $0x14] sm:$0xf]
        %v508 = vld [vmem:[%s501 + $0x18] sm:$0xf]
        %v509 = vld [vmem:[%s501 + $0x1c] sm:$0xf]
        %v510 = vld [vmem:[%s501 + $0x20] sm:$0xf]
        %v511 = vld [vmem:[%s501 + $0x24] sm:$0xf]
        %v512 = vld [vmem:[%s501 + $0x28] sm:$0xf]
        %v513 = vld [vmem:[%s501 + $0x2c] sm:$0xf]
        %v514 = vld [vmem:[%s501 + $0x30] sm:$0xf]
        %v515 = vld [vmem:[%s501 + $0x34] sm:$0xf]
        %v516 = vld [vmem:[%s501 + $0x38] sm:$0xf]
        %v517 = vld [vmem:[%s501 + $0x3c] sm:$0xf]
        %v519 = vunpack.c.l.b16 %v500
        %v520 = vpack.c.b16 %v303, %v519
        %vm521 = vcmask 1046528
        %v522 = vrot.slane %v520, 1
        %v523 = vrot.slane %v306, 1
        %v524 = vsel %vm521, %v522, %v523
        %v542 = vunpack.c.l.b16 %v502
        %v543 = vunpack.c.l.b16 %v503
        %v544 = vunpack.c.l.b16 %v504
        %v545 = vunpack.c.l.b16 %v505
        %v546 = vunpack.c.l.b16 %v506
        %v547 = vunpack.c.l.b16 %v507
        %v548 = vunpack.c.l.b16 %v508
        %v549 = vunpack.c.l.b16 %v509
        %v550 = vunpack.c.l.b16 %v510
        %v551 = vunpack.c.l.b16 %v511
        %v552 = vunpack.c.l.b16 %v512
        %v553 = vunpack.c.l.b16 %v513
        %v554 = vunpack.c.l.b16 %v514
        %v555 = vunpack.c.l.b16 %v515
        %v556 = vunpack.c.l.b16 %v516
        %v557 = vunpack.c.l.b16 %v517
        %v558 = vpack.c.b16 %v543, %v542
        %v559 = vpack.c.b16 %v545, %v544
        %v560 = vpack.c.b16 %v547, %v546
        %v561 = vpack.c.b16 %v549, %v548
        %v562 = vpack.c.b16 %v551, %v550
        %v563 = vpack.c.b16 %v553, %v552
        %v564 = vpack.c.b16 %v555, %v554
        %v565 = vpack.c.b16 %v557, %v556
        %574 = vmatprep.subr.bf16.mxu0 0
        %575 = vmatpush1.bf16.msra.mxu0 %v565
        %576 = vmatprep.subr.bf16.mxu0 0
        %577 = vmatpush1.bf16.msra.mxu0 %v564
        %578 = vmatprep.subr.bf16.mxu0 0
        %579 = vmatpush1.bf16.msra.mxu0 %v563
        %580 = vmatprep.subr.bf16.mxu0 0
        %581 = vmatpush1.bf16.msra.mxu0 %v562
        %582 = vmatprep.subr.bf16.mxu0 0
        %583 = vmatpush1.bf16.msra.mxu0 %v561
        %584 = vmatprep.subr.bf16.mxu0 0
        %585 = vmatpush1.bf16.msra.mxu0 %v560
        %586 = vmatprep.subr.bf16.mxu0 0
        %587 = vmatpush1.bf16.msra.mxu0 %v559
        %588 = vmatprep.subr.bf16.mxu0 0
        %589 = vmatpush1.bf16.msra.mxu0 %v558
        %590 = vmatprep.subr.bf16.mxu0 0
        %591 = vmatpush2.bf16.msra.mxu0 0
        %592 = vmatprep.subr.bf16.mxu0 0
        %593 = vmatpush2.bf16.msra.mxu0 0
        %594 = vmatprep.subr.bf16.mxu0 0
        %595 = vmatpush2.bf16.msra.mxu0 0
        %596 = vmatprep.subr.bf16.mxu0 0
        %597 = vmatpush2.bf16.msra.mxu0 0
        %598 = vmatprep.subr.bf16.mxu0 0
        %599 = vmatpush2.bf16.msra.mxu0 0
        %600 = vmatprep.subr.bf16.mxu0 0
        %601 = vmatpush2.bf16.msra.mxu0 0
        %602 = vmatprep.subr.bf16.mxu0 0
        %603 = vmatpush2.bf16.msra.mxu0 0
        %604 = vmatprep.subr.bf16.mxu0 0
        %605 = vmatpush2.bf16.msra.mxu0 0
        %606 = vmatprep.mubr.bf16.mxu0 0
        %607 = vmatmul.mubr.bf16.gmra.mxu0 %v524
        %v608 = vpop.f32.mrf.mxu0
        %v609 = vadd.f32 0.0, %v608
        %v610 = vpop.f32.mrf.mxu0
        %v611 = vpop.f32.mrf.mxu0
        %v612 = vadd.f32 0.0, %v611
        %v613 = vpop.f32.mrf.mxu0
        %614 = vdwg.mxu0
        %v615 = vadd.f32 %v494, %v609
        %v616 = vadd.f32 %v497, %v612
        %v617 = vmax.f32 %v615, 0.0
        %v618 = vmax.f32 %v616, 0.0
        %v619 = vpack.c.bf16 %v618, %v617
        %v621 = vunpack.c.l.b16 %v619
        %v622 = vunpack.c.h.b16 %v619
        %v623 = vpack.c.b16 %v621, %v621
        %v624 = vpack.c.b16 %v622, %v622
        %v626 = vshrl.u32 %v623, 16
        %v628 = vrot.slane %v626, 7
        %v629 = vshll.u32 %v623, 16
        %v631 = vor.u32 %v628, %v629
        %v632 = vrot.slane %v628, 4
        %v634 = vshrl.u32 %v624, 16
        %v636 = vrot.slane %v634, 7
        %v637 = vshll.u32 %v624, 16
        %v639 = vor.u32 %v636, %v637
        %v640 = vsel %vm233, %v632, %v639
        %v641 = vrot.slane %v636, 4
        %v645 = vsel %vm255, %v631, %v263
        %646 = vst [vmem:[#allocation2] sm:$0xf] %v645
        %647 = vst [vmem:[#allocation2 + $0x4] sm:$0xf] %v640
        %v648 = vld [vmem:[#allocation2 + $0x8] sm:$0x1]
        %v649 = vsel %vm221, %v641, %v648
        %650 = vst [vmem:[#allocation2 + $0x8] sm:$0x1] %v649
        %v651 = vld [vmem:[%s187] sm:$0xf]
        %v652 = vld [vmem:[%s187 + $0x4] sm:$0xf]
        %v653 = vunpack.c.l.bf16 %v651
        %v654 = vunpack.c.l.bf16 %v652
        %v655 = vld [vmem:[#allocation2] sm:$0xf]
        %v656 = vld [vmem:[#allocation2 + $0x4] sm:$0xf]
        %v657 = vld [vmem:[#allocation8] sm:$0xf]
        %v658 = vld [vmem:[#allocation8 + $0x4] sm:$0xf]
        %v659 = vld [vmem:[#allocation8 + $0x8] sm:$0xf]
        %v660 = vld [vmem:[#allocation8 + $0xc] sm:$0xf]
        %v661 = vld [vmem:[#allocation8 + $0x10] sm:$0xf]
        %v662 = vld [vmem:[#allocation8 + $0x14] sm:$0xf]
        %v663 = vld [vmem:[#allocation8 + $0x18] sm:$0xf]
        %v664 = vld [vmem:[#allocation8 + $0x1c] sm:$0xf]
        %v665 = vld [vmem:[#allocation8 + $0x20] sm:$0xf]
        %v666 = vld [vmem:[#allocation8 + $0x24] sm:$0xf]
        %v667 = vld [vmem:[#allocation8 + $0x28] sm:$0xf]
        %v668 = vld [vmem:[#allocation8 + $0x2c] sm:$0xf]
        %v669 = vld [vmem:[#allocation8 + $0x30] sm:$0xf]
        %v670 = vld [vmem:[#allocation8 + $0x34] sm:$0xf]
        %v671 = vld [vmem:[#allocation8 + $0x38] sm:$0xf]
        %v672 = vld [vmem:[#allocation8 + $0x3c] sm:$0xf]
        %v675 = vunpack.c.l.b16 %v655
        %v676 = vunpack.c.l.b16 %v656
        %v677 = vpack.c.b16 %v676, %v675
        %v695 = vunpack.c.l.b16 %v657
        %v696 = vunpack.c.l.b16 %v658
        %v697 = vunpack.c.l.b16 %v659
        %v698 = vunpack.c.l.b16 %v660
        %v699 = vunpack.c.l.b16 %v661
        %v700 = vunpack.c.l.b16 %v662
        %v701 = vunpack.c.l.b16 %v663
        %v702 = vunpack.c.l.b16 %v664
        %v703 = vunpack.c.l.b16 %v665
        %v704 = vunpack.c.l.b16 %v666
        %v705 = vunpack.c.l.b16 %v667
        %v706 = vunpack.c.l.b16 %v668
        %v707 = vunpack.c.l.b16 %v669
        %v708 = vunpack.c.l.b16 %v670
        %v709 = vunpack.c.l.b16 %v671
        %v710 = vunpack.c.l.b16 %v672
        %v711 = vpack.c.b16 %v696, %v695
        %v712 = vpack.c.b16 %v698, %v697
        %v713 = vpack.c.b16 %v700, %v699
        %v714 = vpack.c.b16 %v702, %v701
        %v715 = vpack.c.b16 %v704, %v703
        %v716 = vpack.c.b16 %v706, %v705
        %v717 = vpack.c.b16 %v708, %v707
        %v718 = vpack.c.b16 %v710, %v709
        %727 = vmatprep.subr.bf16.mxu0 0
        %728 = vmatpush1.bf16.msra.mxu0 %v718
        %729 = vmatprep.subr.bf16.mxu0 0
        %730 = vmatpush1.bf16.msra.mxu0 %v717
        %731 = vmatprep.subr.bf16.mxu0 0
        %732 = vmatpush1.bf16.msra.mxu0 %v716
        %733 = vmatprep.subr.bf16.mxu0 0
        %734 = vmatpush1.bf16.msra.mxu0 %v715
        %735 = vmatprep.subr.bf16.mxu0 0
        %736 = vmatpush1.bf16.msra.mxu0 %v714
        %737 = vmatprep.subr.bf16.mxu0 0
        %738 = vmatpush1.bf16.msra.mxu0 %v713
        %739 = vmatprep.subr.bf16.mxu0 0
        %740 = vmatpush1.bf16.msra.mxu0 %v712
        %741 = vmatprep.subr.bf16.mxu0 0
        %742 = vmatpush1.bf16.msra.mxu0 %v711
        %743 = vmatprep.subr.bf16.mxu0 0
        %744 = vmatpush2.bf16.msra.mxu0 0
        %745 = vmatprep.subr.bf16.mxu0 0
        %746 = vmatpush2.bf16.msra.mxu0 0
        %747 = vmatprep.subr.bf16.mxu0 0
        %748 = vmatpush2.bf16.msra.mxu0 0
        %749 = vmatprep.subr.bf16.mxu0 0
        %750 = vmatpush2.bf16.msra.mxu0 0
        %751 = vmatprep.subr.bf16.mxu0 0
        %752 = vmatpush2.bf16.msra.mxu0 0
        %753 = vmatprep.subr.bf16.mxu0 0
        %754 = vmatpush2.bf16.msra.mxu0 0
        %755 = vmatprep.subr.bf16.mxu0 0
        %756 = vmatpush2.bf16.msra.mxu0 0
        %757 = vmatprep.subr.bf16.mxu0 0
        %758 = vmatpush2.bf16.msra.mxu0 0
        %759 = vmatprep.mubr.bf16.mxu0 0
        %760 = vmatmul.mubr.bf16.gmra.mxu0 %v677
        %v761 = vpop.f32.mrf.mxu0
        %v762 = vadd.f32 0.0, %v761
        %v763 = vpop.f32.mrf.mxu0
        %v764 = vpop.f32.mrf.mxu0
        %v765 = vadd.f32 0.0, %v764
        %v766 = vpop.f32.mrf.mxu0
        %767 = vdwg.mxu0
        %v768 = vadd.f32 %v653, %v762
        %v769 = vadd.f32 %v654, %v765
        %v770 = vld [vmem:[#allocation2] sm:$0xf]
        %v771 = vld [vmem:[#allocation2 + $0x4] sm:$0xf]
        %v772 = vld [vmem:[#allocation2 + $0x8] sm:$0x1]
        %s773 = scalar_lea.vmem [#allocation8], 64
        %v774 = vld [vmem:[%s773] sm:$0xf]
        %v775 = vld [vmem:[%s773 + $0x4] sm:$0xf]
        %v776 = vld [vmem:[%s773 + $0x8] sm:$0xf]
        %v777 = vld [vmem:[%s773 + $0xc] sm:$0xf]
        %v778 = vld [vmem:[%s773 + $0x10] sm:$0xf]
        %v779 = vld [vmem:[%s773 + $0x14] sm:$0xf]
        %v780 = vld [vmem:[%s773 + $0x18] sm:$0xf]
        %v781 = vld [vmem:[%s773 + $0x1c] sm:$0xf]
        %v782 = vld [vmem:[%s773 + $0x20] sm:$0xf]
        %v783 = vld [vmem:[%s773 + $0x24] sm:$0xf]
        %v784 = vld [vmem:[%s773 + $0x28] sm:$0xf]
        %v785 = vld [vmem:[%s773 + $0x2c] sm:$0xf]
        %v786 = vld [vmem:[%s773 + $0x30] sm:$0xf]
        %v787 = vld [vmem:[%s773 + $0x34] sm:$0xf]
        %v788 = vld [vmem:[%s773 + $0x38] sm:$0xf]
        %v789 = vld [vmem:[%s773 + $0x3c] sm:$0xf]
        %v793 = vunpack.c.l.b16 %v770
        %v794 = vunpack.c.l.b16 %v771
        %v795 = vunpack.c.l.b16 %v772
        %v796 = vpack.c.b16 %v794, %v793
        %v797 = vpack.c.b16 %v795, %v795
        %v799 = vshrl.u32 %v796, 16
        %v801 = vshll.u32 %v796, 16
        %v803 = vrot.slane %v801, 1
        %v804 = vor.u32 %v799, %v803
        %v806 = vshll.u32 %v797, 16
        %v808 = vrot.slane %v806, 1
        %v809 = vsel %vm307, %v804, %v808
        %v827 = vunpack.c.l.b16 %v774
        %v828 = vunpack.c.l.b16 %v775
        %v829 = vunpack.c.l.b16 %v776
        %v830 = vunpack.c.l.b16 %v777
        %v831 = vunpack.c.l.b16 %v778
        %v832 = vunpack.c.l.b16 %v779
        %v833 = vunpack.c.l.b16 %v780
        %v834 = vunpack.c.l.b16 %v781
        %v835 = vunpack.c.l.b16 %v782
        %v836 = vunpack.c.l.b16 %v783
        %v837 = vunpack.c.l.b16 %v784
        %v838 = vunpack.c.l.b16 %v785
        %v839 = vunpack.c.l.b16 %v786
        %v840 = vunpack.c.l.b16 %v787
        %v841 = vunpack.c.l.b16 %v788
        %v842 = vunpack.c.l.b16 %v789
        %v843 = vpack.c.b16 %v828, %v827
        %v844 = vpack.c.b16 %v830, %v829
        %v845 = vpack.c.b16 %v832, %v831
        %v846 = vpack.c.b16 %v834, %v833
        %v847 = vpack.c.b16 %v836, %v835
        %v848 = vpack.c.b16 %v838, %v837
        %v849 = vpack.c.b16 %v840, %v839
        %v850 = vpack.c.b16 %v842, %v841
        %859 = vmatprep.subr.bf16.mxu0 0
        %860 = vmatpush1.bf16.msra.mxu0 %v850
        %861 = vmatprep.subr.bf16.mxu0 0
        %862 = vmatpush1.bf16.msra.mxu0 %v849
        %863 = vmatprep.subr.bf16.mxu0 0
        %864 = vmatpush1.bf16.msra.mxu0 %v848
        %865 = vmatprep.subr.bf16.mxu0 0
        %866 = vmatpush1.bf16.msra.mxu0 %v847
        %867 = vmatprep.subr.bf16.mxu0 0
        %868 = vmatpush1.bf16.msra.mxu0 %v846
        %869 = vmatprep.subr.bf16.mxu0 0
        %870 = vmatpush1.bf16.msra.mxu0 %v845
        %871 = vmatprep.subr.bf16.mxu0 0
        %872 = vmatpush1.bf16.msra.mxu0 %v844
        %873 = vmatprep.subr.bf16.mxu0 0
        %874 = vmatpush1.bf16.msra.mxu0 %v843
        %875 = vmatprep.subr.bf16.mxu0 0
        %876 = vmatpush2.bf16.msra.mxu0 0
        %877 = vmatprep.subr.bf16.mxu0 0
        %878 = vmatpush2.bf16.msra.mxu0 0
        %879 = vmatprep.subr.bf16.mxu0 0
        %880 = vmatpush2.bf16.msra.mxu0 0
        %881 = vmatprep.subr.bf16.mxu0 0
        %882 = vmatpush2.bf16.msra.mxu0 0
        %883 = vmatprep.subr.bf16.mxu0 0
        %884 = vmatpush2.bf16.msra.mxu0 0
        %885 = vmatprep.subr.bf16.mxu0 0
        %886 = vmatpush2.bf16.msra.mxu0 0
        %887 = vmatprep.subr.bf16.mxu0 0
        %888 = vmatpush2.bf16.msra.mxu0 0
        %889 = vmatprep.subr.bf16.mxu0 0
        %890 = vmatpush2.bf16.msra.mxu0 0
        %891 = vmatprep.mubr.bf16.mxu0 0
        %892 = vmatmul.mubr.bf16.gmra.mxu0 %v809
        %v893 = vpop.f32.mrf.mxu0
        %v894 = vadd.f32 0.0, %v893
        %v895 = vpop.f32.mrf.mxu0
        %v896 = vpop.f32.mrf.mxu0
        %v897 = vadd.f32 0.0, %v896
        %v898 = vpop.f32.mrf.mxu0
        %899 = vdwg.mxu0
        %v900 = vadd.f32 %v768, %v894
        %v901 = vadd.f32 %v769, %v897
        %v902 = vld [vmem:[#allocation2] sm:$0xe]
        %s903 = scalar_lea.vmem [#allocation8], 128
        %v904 = vld [vmem:[%s903] sm:$0xf]
        %v905 = vld [vmem:[%s903 + $0x4] sm:$0xf]
        %v906 = vld [vmem:[%s903 + $0x8] sm:$0xf]
        %v907 = vld [vmem:[%s903 + $0xc] sm:$0xf]
        %v908 = vld [vmem:[%s903 + $0x10] sm:$0xf]
        %v909 = vld [vmem:[%s903 + $0x14] sm:$0xf]
        %v910 = vld [vmem:[%s903 + $0x18] sm:$0xf]
        %v911 = vld [vmem:[%s903 + $0x1c] sm:$0xf]
        %v912 = vld [vmem:[%s903 + $0x20] sm:$0xf]
        %v913 = vld [vmem:[%s903 + $0x24] sm:$0xf]
        %v914 = vld [vmem:[%s903 + $0x28] sm:$0xf]
        %v915 = vld [vmem:[%s903 + $0x2c] sm:$0xf]
        %v916 = vld [vmem:[%s903 + $0x30] sm:$0xf]
        %v917 = vld [vmem:[%s903 + $0x34] sm:$0xf]
        %v918 = vld [vmem:[%s903 + $0x38] sm:$0xf]
        %v919 = vld [vmem:[%s903 + $0x3c] sm:$0xf]
        %v921 = vunpack.c.l.b16 %v902
        %v922 = vpack.c.b16 %v794, %v921
        %v923 = vrot.slane %v922, 1
        %v924 = vrot.slane %v797, 1
        %v925 = vsel %vm521, %v923, %v924
        %v943 = vunpack.c.l.b16 %v904
        %v944 = vunpack.c.l.b16 %v905
        %v945 = vunpack.c.l.b16 %v906
        %v946 = vunpack.c.l.b16 %v907
        %v947 = vunpack.c.l.b16 %v908
        %v948 = vunpack.c.l.b16 %v909
        %v949 = vunpack.c.l.b16 %v910
        %v950 = vunpack.c.l.b16 %v911
        %v951 = vunpack.c.l.b16 %v912
        %v952 = vunpack.c.l.b16 %v913
        %v953 = vunpack.c.l.b16 %v914
        %v954 = vunpack.c.l.b16 %v915
        %v955 = vunpack.c.l.b16 %v916
        %v956 = vunpack.c.l.b16 %v917
        %v957 = vunpack.c.l.b16 %v918
        %v958 = vunpack.c.l.b16 %v919
        %v959 = vpack.c.b16 %v944, %v943
        %v960 = vpack.c.b16 %v946, %v945
        %v961 = vpack.c.b16 %v948, %v947
        %v962 = vpack.c.b16 %v950, %v949
        %v963 = vpack.c.b16 %v952, %v951
        %v964 = vpack.c.b16 %v954, %v953
        %v965 = vpack.c.b16 %v956, %v955
        %v966 = vpack.c.b16 %v958, %v957
        %975 = vmatprep.subr.bf16.mxu0 0
        %976 = vmatpush1.bf16.msra.mxu0 %v966
        %977 = vmatprep.subr.bf16.mxu0 0
        %978 = vmatpush1.bf16.msra.mxu0 %v965
        %979 = vmatprep.subr.bf16.mxu0 0
        %980 = vmatpush1.bf16.msra.mxu0 %v964
        %981 = vmatprep.subr.bf16.mxu0 0
        %982 = vmatpush1.bf16.msra.mxu0 %v963
        %983 = vmatprep.subr.bf16.mxu0 0
        %984 = vmatpush1.bf16.msra.mxu0 %v962
        %985 = vmatprep.subr.bf16.mxu0 0
        %986 = vmatpush1.bf16.msra.mxu0 %v961
        %987 = vmatprep.subr.bf16.mxu0 0
        %988 = vmatpush1.bf16.msra.mxu0 %v960
        %989 = vmatprep.subr.bf16.mxu0 0
        %990 = vmatpush1.bf16.msra.mxu0 %v959
        %991 = vmatprep.subr.bf16.mxu0 0
        %992 = vmatpush2.bf16.msra.mxu0 0
        %993 = vmatprep.subr.bf16.mxu0 0
        %994 = vmatpush2.bf16.msra.mxu0 0
        %995 = vmatprep.subr.bf16.mxu0 0
        %996 = vmatpush2.bf16.msra.mxu0 0
        %997 = vmatprep.subr.bf16.mxu0 0
        %998 = vmatpush2.bf16.msra.mxu0 0
        %999 = vmatprep.subr.bf16.mxu0 0
        %1000 = vmatpush2.bf16.msra.mxu0 0
        %1001 = vmatprep.subr.bf16.mxu0 0
        %1002 = vmatpush2.bf16.msra.mxu0 0
        %1003 = vmatprep.subr.bf16.mxu0 0
        %1004 = vmatpush2.bf16.msra.mxu0 0
        %1005 = vmatprep.subr.bf16.mxu0 0
        %1006 = vmatpush2.bf16.msra.mxu0 0
        %1007 = vmatprep.mubr.bf16.mxu0 0
        %1008 = vmatmul.mubr.bf16.gmra.mxu0 %v925
        %v1009 = vpop.f32.mrf.mxu0
        %v1010 = vadd.f32 0.0, %v1009
        %v1011 = vpop.f32.mrf.mxu0
        %v1012 = vpop.f32.mrf.mxu0
        %v1013 = vadd.f32 0.0, %v1012
        %v1014 = vpop.f32.mrf.mxu0
        %1015 = vdwg.mxu0
        %v1016 = vadd.f32 %v900, %v1010
        %v1017 = vadd.f32 %v901, %v1013
        %v1018 = vmax.f32 %v1016, 0.0
        %v1019 = vmax.f32 %v1017, 0.0
        %1020 = vst [vmem:[%s217] sm:$0xff] %v1018
        %1021 = vst [vmem:[%s217 + $0x8] sm:$0xff] %v1019
        %s1022 = sand.u32 %s97, 1
        %s1023 = scalar_lea.sflag [#allocation5], %s1022
        %s1024 = sand.u32 %s97, 1
        %s1025 = smul.addr %s1024, 16
        %s1026 = scalar_lea.vmem [#allocation9], %s1025
        // Predicated region
        $region45: #{tpu_custom_call.1} parent=31 // pred_check
          %p1027 = pneg %p107
        $region46: #{tpu_custom_call.1} parent=31 // pred_check_branch
          %1029 = sbr.rel (%p1027) target = $region48
        $region47: #{tpu_custom_call.1} parent=31 // pred_region
          %s1031 = ssub.s32 256, 256
          %1032 = vsyncadd %s1023, %s1031
          %s1033 = smul.addr %s21, 2
          %s1034 = smul.addr %s1033, 128
          %s1035 = scalar_lea.hbm %s3, %s1034
          %s1036 = sshll.u32 %s1026, 4
          %s1037 = int_to_ptr.vmem [resolvable:$true] %s1036
          %1042 = dma.vmem_to_hbm [thread:$0]  %s1037, 256, %s1035, %s1023, 128, 128, 8
        $region48: #{tpu_custom_call.1} parent=31 // pred_fallthru
          _
      $region32: #{tpu_custom_call.1} parent=5 // pred_fallthru
        _
      %p1043 = scmp.le.s32.totalorder 2, %s16
      // Predicated region
      $region49: #{tpu_custom_call.1} parent=5 // pred_check
        %p1044 = pneg %p1043
      $region50: #{tpu_custom_call.1} parent=5 // pred_check_branch
        %1046 = sbr.rel (%p1044) target = $region52
      $region51: #{tpu_custom_call.1} parent=5 // pred_region
        %s1047 = ssub.s32 %s16, 2
        // Predicated region
        $region53: #{tpu_custom_call.1} parent=51 // pred_check
          %p1048 = pneg %p113
        $region54: #{tpu_custom_call.1} parent=51 // pred_check_branch
          %1050 = sbr.rel (%p1048) target = $region56
        $region55: #{tpu_custom_call.1} parent=51 // pred_region
          %s1051 = sand.u32 %s98, 1
          %s1052 = scalar_lea.sflag [#allocation5], %s1051
          %s1053 = sand.u32 %s98, 1
          %s1054 = smul.addr %s1053, 16
          %s1055 = scalar_lea.vmem [#allocation9], %s1054
          %1056 = dma.done %s1052, 256
        $region56: #{tpu_custom_call.1} parent=51 // pred_fallthru
          _
      $region52: #{tpu_custom_call.1} parent=5 // pred_fallthru
        _
    $region6: #{tpu_custom_call.1} parent=1 // loop_footer
      %s20 = sadd.s32 1, %s16
    $region7: #{tpu_custom_call.1} parent=1 // loop_footer_branch
      %15 = sbr.rel target = $region3
    $region8: #{tpu_custom_call.1} parent=1 // loop_exit
      _
    %1057 = vsyncpa [#allocation4], 1
    %s1058 = scalar_lea.sflag [#allocation4], 1
    %1059 = vsyncpa %s1058, 1
    %1060 = vsyncpa [#allocation7], 1
    %1061 = vsyncpa [#allocation5], 1
    %s1062 = scalar_lea.sflag [#allocation5], 1
    %1063 = vsyncpa %s1062, 1

</llo_original>
